<compile_context>
chip_gen: v6e
topology: v6e:2x2x1
jax: 0.10.0
libtpu: 0.0.40
codegen_flags: <defaults>
</compile_context>

<pallas_src>
import functools

import jax
import jax.numpy as jnp
from jax.experimental import pallas as pl
from jax.experimental.pallas import tpu as pltpu


def _gcn_kernel(p_ref, x_ref, w_ref, b_ref, o_ref, *, B, N, K, Din):
    # p_ref: (K*N, N)    row-stacked supports, p_ref[k*N + n, j] = G[k, n, j]
    # x_ref: (N, B*Din)  batch folded into lanes, x_ref[j, b*Din + d] = x[b, j, d]
    # w_ref: (K*Din, H)  stacked GCN weight (same layout as the PyTorch module)
    # b_ref: (1, H)
    # o_ref: (B*N, H)    row b*N + n holds out[b, n, :]

    # 1) Diffusion for all supports and all batches in one matmul.
    #    d[k*N + n, b*Din + dd] = sum_j G[k, n, j] * x[b, j, dd]
    d = jnp.dot(p_ref[...], x_ref[...], preferred_element_type=jnp.float32)

    # 2) Rearrange to (B*N, K*Din) so the weight application is one wide matmul.
    #    S[b*N + n, k*Din + dd] = d[k*N + n, b*Din + dd]   (static slices/concat)
    rows = []
    for b in range(B):
        cols = [d[k * N:(k + 1) * N, b * Din:(b + 1) * Din] for k in range(K)]
        rows.append(jnp.concatenate(cols, axis=-1))          # (N, K*Din)
    s_all = jnp.concatenate(rows, axis=0)                    # (B*N, K*Din)

    # 3) Fused weight matmul + bias + ReLU, single full-block store.
    out = jnp.dot(s_all, w_ref[...], preferred_element_type=jnp.float32)
    out = jnp.maximum(out + b_ref[...], 0.0)
    o_ref[...] = out.astype(o_ref.dtype)


def gcn_forward(G, x, W, b):
    """GCN forward with a Pallas TPU kernel.

    G: (K, N, N) float32 support adjacency matrices
    x: (B, N, Din) float32 graph signal
    W: (K*Din, H) float32, b: (H,) float32
    returns: (B, N, H) float32
    """
    K, N, _ = G.shape
    B, _, Din = x.shape
    H = W.shape[-1]
    assert W.shape[0] == K * Din

    # Wrapper-side layout plumbing (cheap XLA ops, outside the kernel):
    p_rows = G.reshape(K * N, N)                              # (K*N, N)
    x_nf = jnp.transpose(x, (1, 0, 2)).reshape(N, B * Din)    # (N, B*Din)
    b2 = b.reshape(1, H)

    kernel = functools.partial(_gcn_kernel, B=B, N=N, K=K, Din=Din)

    full2d = lambda shape: pl.BlockSpec(shape, lambda i: (0, 0))

    flops = 2 * K * N * N * B * Din + 2 * B * N * K * Din * H
    bytes_accessed = 4 * (K * N * N + B * N * Din + K * Din * H + H + B * N * H)

    out_flat = pl.pallas_call(
        kernel,
        out_shape=jax.ShapeDtypeStruct((B * N, H), jnp.float32),
        grid_spec=pltpu.PrefetchScalarGridSpec(
            num_scalar_prefetch=0,
            grid=(1,),                     # whole problem in one invocation
            in_specs=[
                full2d((K * N, N)),        # P (row-stacked supports)
                full2d((N, B * Din)),      # x (batch in lanes)
                full2d((K * Din, H)),      # W
                full2d((1, H)),            # b
            ],
            out_specs=full2d((B * N, H)),
        ),
        compiler_params=pltpu.CompilerParams(
            dimension_semantics=("arbitrary",)),
        cost_estimate=pl.CostEstimate(
            flops=flops, transcendentals=0, bytes_accessed=bytes_accessed),
    )(p_rows, x_nf, W, b2)

    return out_flat.reshape(B, N, H)


def init_gcn_params(key, K, Din, H):
    """Mirror the PyTorch init: xavier_normal_ W (K*Din, H), zero bias."""
    std = (2.0 / (K * Din + H)) ** 0.5
    W = std * jax.random.normal(key, (K * Din, H), dtype=jnp.float32)
    b = jnp.zeros((H,), jnp.float32)
    return W, b


if __name__ == "__main__":
    # Small shapes consistent with the module's forward.
    B, N, Din, H, K = 2, 16, 4, 32, 3

    key = jax.random.PRNGKey(0)
    k_g, k_x, k_w = jax.random.split(key, 3)

    # Row-normalized random supports (like diffusion transition matrices).
    G_raw = jax.random.uniform(k_g, (K, N, N), dtype=jnp.float32)
    G = G_raw / jnp.sum(G_raw, axis=-1, keepdims=True)

    x = jax.random.normal(k_x, (B, N, Din), dtype=jnp.float32)
    W, b = init_gcn_params(k_w, K, Din, H)

    out = gcn_forward(G, x, W, b)
    jax.block_until_ready(out)

    # Pure-JAX reference (same math as the PyTorch module).
    supports = jnp.concatenate(
        [jnp.einsum('ij,bjp->bip', G[k], x) for k in range(K)], axis=-1)
    ref = jnp.maximum(jnp.einsum('bip,pq->biq', supports, W) + b, 0.0)

    assert out.shape == (B, N, H)
    assert out.dtype == jnp.float32
    assert jnp.allclose(out, ref, atol=1e-2, rtol=1e-2)
    print("KERNEL_OK")
</pallas_src>

<mosaic_0001>
module attributes {stable_mosaic.version = 11 : i64} {
  func.func @_gcn_kernel(%arg0: i32, %arg1: memref<48x16xf32, #tpu.memory_space<vmem>>, %arg2: memref<16x8xf32, #tpu.memory_space<vmem>>, %arg3: memref<12x32xf32, #tpu.memory_space<vmem>>, %arg4: memref<1x32xf32, #tpu.memory_space<vmem>>, %arg5: memref<32x32xf32, #tpu.memory_space<vmem>>) attributes {dimension_semantics = [#tpu.dimension_semantics<arbitrary>], iteration_bounds = array<i64: 1>, scalar_prefetch = 0 : i64, scratch_operands = 0 : i64, tpu.core_type = #tpu.core_type<tc>, window_params = [{pipeline_mode = #tpu.pipeline_mode<synchronous>, transform_indices = @transform_0, window_bounds = array<i64: 48, 16>}, {pipeline_mode = #tpu.pipeline_mode<synchronous>, transform_indices = @transform_1, window_bounds = array<i64: 16, 8>}, {pipeline_mode = #tpu.pipeline_mode<synchronous>, transform_indices = @transform_2, window_bounds = array<i64: 12, 32>}, {pipeline_mode = #tpu.pipeline_mode<synchronous>, transform_indices = @transform_3, window_bounds = array<i64: 1, 32>}, {pipeline_mode = #tpu.pipeline_mode<synchronous>, transform_indices = @transform_4, window_bounds = array<i64: 32, 32>}]} {
    %c0 = arith.constant 0 : index
    %c0_0 = arith.constant 0 : index
    %0 = vector.load %arg1[%c0, %c0_0] : memref<48x16xf32, #tpu.memory_space<vmem>>, vector<48x16xf32>
    %c0_1 = arith.constant 0 : index
    %c0_2 = arith.constant 0 : index
    %1 = vector.load %arg2[%c0_1, %c0_2] : memref<16x8xf32, #tpu.memory_space<vmem>>, vector<16x8xf32>
    %cst = arith.constant dense<0.000000e+00> : vector<48x8xf32>
    %2 = tpu.matmul %0, %1, %cst {dimension_numbers = #tpu.dot_dimension_numbers<[1], [0], [0], [1], [0, 0, 1, 1], [], []>} : vector<48x16xf32>, vector<16x8xf32>, vector<48x8xf32> -> vector<48x8xf32>
    %3 = vector.extract_strided_slice %2 {offsets = [0, 0], sizes = [16, 4], strides = [1, 1]} : vector<48x8xf32> to vector<16x4xf32>
    %4 = vector.extract_strided_slice %2 {offsets = [16, 0], sizes = [16, 4], strides = [1, 1]} : vector<48x8xf32> to vector<16x4xf32>
    %5 = vector.extract_strided_slice %2 {offsets = [32, 0], sizes = [16, 4], strides = [1, 1]} : vector<48x8xf32> to vector<16x4xf32>
    %6 = tpu.concatenate %3, %4, %5 in 1 : vector<16x4xf32>, vector<16x4xf32>, vector<16x4xf32> -> vector<16x12xf32>
    %7 = vector.extract_strided_slice %2 {offsets = [0, 4], sizes = [16, 4], strides = [1, 1]} : vector<48x8xf32> to vector<16x4xf32>
    %8 = vector.extract_strided_slice %2 {offsets = [16, 4], sizes = [16, 4], strides = [1, 1]} : vector<48x8xf32> to vector<16x4xf32>
    %9 = vector.extract_strided_slice %2 {offsets = [32, 4], sizes = [16, 4], strides = [1, 1]} : vector<48x8xf32> to vector<16x4xf32>
    %10 = tpu.concatenate %7, %8, %9 in 1 : vector<16x4xf32>, vector<16x4xf32>, vector<16x4xf32> -> vector<16x12xf32>
    %11 = tpu.concatenate %6, %10 in 0 : vector<16x12xf32>, vector<16x12xf32> -> vector<32x12xf32>
    %c0_3 = arith.constant 0 : index
    %c0_4 = arith.constant 0 : index
    %12 = vector.load %arg3[%c0_3, %c0_4] : memref<12x32xf32, #tpu.memory_space<vmem>>, vector<12x32xf32>
    %cst_5 = arith.constant dense<0.000000e+00> : vector<32x32xf32>
    %13 = tpu.matmul %11, %12, %cst_5 {dimension_numbers = #tpu.dot_dimension_numbers<[1], [0], [0], [1], [0, 0, 1, 1], [], []>} : vector<32x12xf32>, vector<12x32xf32>, vector<32x32xf32> -> vector<32x32xf32>
    %c0_6 = arith.constant 0 : index
    %c0_7 = arith.constant 0 : index
    %14 = vector.load %arg4[%c0_6, %c0_7] : memref<1x32xf32, #tpu.memory_space<vmem>>, vector<1x32xf32>
    %15 = vector.broadcast %14 : vector<1x32xf32> to vector<32x32xf32>
    %16 = arith.addf %13, %15 : vector<32x32xf32>
    %cst_8 = arith.constant 0.000000e+00 : f32
    %17 = vector.broadcast %cst_8 : f32 to vector<32x32xf32>
    %18 = arith.maximumf %16, %17 : vector<32x32xf32>
    %c0_9 = arith.constant 0 : index
    %c0_10 = arith.constant 0 : index
    %19 = vector.load %arg5[%c0_9, %c0_10] : memref<32x32xf32, #tpu.memory_space<vmem>>, vector<32x32xf32>
    tpu.vector_store %arg5[%c0_9, %c0_10], %18 {strides = array<i32>} : memref<32x32xf32, #tpu.memory_space<vmem>>, vector<32x32xf32>,
    return
  }
  func.func @transform_0(%arg0: i32) -> (i32, i32) {
    %c0_i32 = arith.constant 0 : i32
    %c0_i32_0 = arith.constant 0 : i32
    %c0_i32_1 = arith.constant 0 : i32
    return %c0_i32, %c0_i32_0 : i32, i32
  }
  func.func @transform_1(%arg0: i32) -> (i32, i32) {
    %c0_i32 = arith.constant 0 : i32
    %c0_i32_0 = arith.constant 0 : i32
    %c0_i32_1 = arith.constant 0 : i32
    return %c0_i32, %c0_i32_0 : i32, i32
  }
  func.func @transform_2(%arg0: i32) -> (i32, i32) {
    %c0_i32 = arith.constant 0 : i32
    %c0_i32_0 = arith.constant 0 : i32
    %c0_i32_1 = arith.constant 0 : i32
    return %c0_i32, %c0_i32_0 : i32, i32
  }
  func.func @transform_3(%arg0: i32) -> (i32, i32) {
    %c0_i32 = arith.constant 0 : i32
    %c0_i32_0 = arith.constant 0 : i32
    %c0_i32_1 = arith.constant 0 : i32
    return %c0_i32, %c0_i32_0 : i32, i32
  }
  func.func @transform_4(%arg0: i32) -> (i32, i32) {
    %c0_i32 = arith.constant 0 : i32
    %c0_i32_0 = arith.constant 0 : i32
    %c0_i32_1 = arith.constant 0 : i32
    return %c0_i32, %c0_i32_0 : i32, i32
  }
}

</mosaic_0001>

<llo_original>
// kernel: tpu_custom_call.1
$region0: #{tpu_custom_call.1}
  #allocation0 [shape = 'u32[]', space=smem, size = 0x4, offset = 0x4, fixed_abs, tag = 'smem constant byte address 0x4 - core index']
  #allocation1 [shape = 'u32[144,128]{1,0:T(1,128)}', space=vmem, size = 0x12000, scoped, tag = 'internal scratch']
  %s0 = inlined_call_operand.vmem [shape: f32[48,16], index: 0, kind: input, shape index: {}]
  %s1 = inlined_call_operand.vmem [shape: f32[16,8], index: 1, kind: input, shape index: {}]
  %s2 = inlined_call_operand.vmem [shape: f32[12,32], index: 2, kind: input, shape index: {}]
  %s3 = inlined_call_operand.vmem [shape: f32[1,32], index: 3, kind: input, shape index: {}]
  %s4 = inlined_call_operand.hbm [shape: f32[32,32], index: 4, kind: output, shape index: {}]
  %s5 = sld [smem:[#allocation0]]
  $region26: #{tpu_custom_call.1} parent=0
    _
  %s7 = ssub.s32 1, %s5
  %s8 = scalar_select 0, %s7, %s5
  $region1: #{tpu_custom_call.1} parent=0
    #allocation2 [shape = 'u8[16384]{0}', space=vmem, size = 0x4000, scoped, tag = 'output window, operand 0, single buffered']
    #allocation3 [shape = 's32[1]{0}', space=sflag, size = 0x4, scoped, tag = 'scoped memory for tpu_custom_call.1']
    %9 = vsyncpa [#allocation3], 0
    // Predicated region
    $region2: #{tpu_custom_call.1} parent=1 // pred_check
      _
    $region3: #{tpu_custom_call.1} parent=1 // pred_check_branch
      %11 = sbr.rel (0) target = $region5
    $region4: #{tpu_custom_call.1} parent=1 // pred_region
      _
    $region5: #{tpu_custom_call.1} parent=1 // pred_fallthru
      _
    // Predicated region
    $region6: #{tpu_custom_call.1} parent=1 // pred_check
      _
    $region7: #{tpu_custom_call.1} parent=1 // pred_check_branch
      %13 = sbr.rel (0) target = $region9
    $region8: #{tpu_custom_call.1} parent=1 // pred_region
      _
    $region9: #{tpu_custom_call.1} parent=1 // pred_fallthru
      _
    // Predicated region
    $region10: #{tpu_custom_call.1} parent=1 // pred_check
      _
    $region11: #{tpu_custom_call.1} parent=1 // pred_check_branch
      %15 = sbr.rel (0) target = $region13
    $region12: #{tpu_custom_call.1} parent=1 // pred_region
      _
    $region13: #{tpu_custom_call.1} parent=1 // pred_fallthru
      _
    // Predicated region
    $region14: #{tpu_custom_call.1} parent=1 // pred_check
      _
    $region15: #{tpu_custom_call.1} parent=1 // pred_check_branch
      %17 = sbr.rel (0) target = $region17
    $region16: #{tpu_custom_call.1} parent=1 // pred_region
      _
    $region17: #{tpu_custom_call.1} parent=1 // pred_fallthru
      _
    %v18 = vld [vmem:[%s0] sm:$0xff]
    %v19 = vld [vmem:[%s0 + $0x8] sm:$0xff]
    %v20 = vld [vmem:[%s0 + $0x10] sm:$0xff]
    %v21 = vld [vmem:[%s0 + $0x18] sm:$0xff]
    %v22 = vld [vmem:[%s0 + $0x20] sm:$0xff]
    %v23 = vld [vmem:[%s0 + $0x28] sm:$0xff]
    %v24 = vld [vmem:[%s1] sm:$0xff]
    %v25 = vld [vmem:[%s1 + $0x8] sm:$0xff]
    %vm26 = vcmask 130048
    %v28 = vsel %vm26, %v18, 0
    %v31 = vsel %vm26, %v19, 0
    %v34 = vsel %vm26, %v20, 0
    %v37 = vsel %vm26, %v21, 0
    %v40 = vsel %vm26, %v22, 0
    %v43 = vsel %vm26, %v23, 0
    %45 = vmatprep.subr.mxu0 0.0
    %46 = vmatpush1.msra.mxu0 0.0
    %47 = vmatprep.subr.mxu0 0.0
    %48 = vmatpush1.msra.mxu0 0.0
    %49 = vmatprep.subr.mxu0 0.0
    %50 = vmatpush1.msra.mxu0 0.0
    %51 = vmatprep.subr.mxu0 0.0
    %52 = vmatpush1.msra.mxu0 0.0
    %53 = vmatprep.subr.mxu0 0.0
    %54 = vmatpush1.msra.mxu0 0.0
    %55 = vmatprep.subr.mxu0 0.0
    %56 = vmatpush1.msra.mxu0 0.0
    %57 = vmatprep.subr.mxu0 0.0
    %58 = vmatpush1.msra.mxu0 0.0
    %59 = vmatprep.subr.mxu0 0.0
    %60 = vmatpush1.msra.mxu0 0.0
    %61 = vmatprep.subr.mxu0 0.0
    %62 = vmatpush1.msra.mxu0 0.0
    %63 = vmatprep.subr.mxu0 0.0
    %64 = vmatpush1.msra.mxu0 0.0
    %65 = vmatprep.subr.mxu0 0.0
    %66 = vmatpush1.msra.mxu0 0.0
    %67 = vmatprep.subr.mxu0 0.0
    %68 = vmatpush1.msra.mxu0 0.0
    %69 = vmatprep.subr.mxu0 0.0
    %70 = vmatpush1.msra.mxu0 0.0
    %71 = vmatprep.subr.mxu0 0.0
    %72 = vmatpush1.msra.mxu0 0.0
    %73 = vmatprep.subr.mxu0 0.0
    %74 = vmatpush1.msra.mxu0 %v25
    %75 = vmatprep.subr.mxu0 0.0
    %76 = vmatpush1.msra.mxu0 %v24
    %77 = vmatprep.subr.mxu0 0.0
    %78 = vmatpush2.msra.mxu0 0.0
    %79 = vmatprep.subr.mxu0 0.0
    %80 = vmatpush2.msra.mxu0 0.0
    %81 = vmatprep.subr.mxu0 0.0
    %82 = vmatpush2.msra.mxu0 0.0
    %83 = vmatprep.subr.mxu0 0.0
    %84 = vmatpush2.msra.mxu0 0.0
    %85 = vmatprep.subr.mxu0 0.0
    %86 = vmatpush2.msra.mxu0 0.0
    %87 = vmatprep.subr.mxu0 0.0
    %88 = vmatpush2.msra.mxu0 0.0
    %89 = vmatprep.subr.mxu0 0.0
    %90 = vmatpush2.msra.mxu0 0.0
    %91 = vmatprep.subr.mxu0 0.0
    %92 = vmatpush2.msra.mxu0 0.0
    %93 = vmatprep.subr.mxu0 0.0
    %94 = vmatpush2.msra.mxu0 0.0
    %95 = vmatprep.subr.mxu0 0.0
    %96 = vmatpush2.msra.mxu0 0.0
    %97 = vmatprep.subr.mxu0 0.0
    %98 = vmatpush2.msra.mxu0 0.0
    %99 = vmatprep.subr.mxu0 0.0
    %100 = vmatpush2.msra.mxu0 0.0
    %101 = vmatprep.subr.mxu0 0.0
    %102 = vmatpush2.msra.mxu0 0.0
    %103 = vmatprep.subr.mxu0 0.0
    %104 = vmatpush2.msra.mxu0 0.0
    %105 = vmatprep.subr.mxu0 0.0
    %106 = vmatpush2.msra.mxu0 0.0
    %107 = vmatprep.subr.mxu0 0.0
    %108 = vmatpush2.msra.mxu0 0.0
    %109 = vmatprep.mubr.f32.mxu0 0.0
    %110 = vmatmul.mubr.f32.gmra.mxu0 %v28
    %v111 = vpop.f32.mrf.mxu0
    %v112 = vadd.f32 0.0, %v111
    %v113 = vpop.f32.mrf.mxu0
    %114 = vmatprep.mubr.f32.mxu0 0.0
    %115 = vmatmul.mubr.f32.gmra.mxu0 %v31
    %v116 = vpop.f32.mrf.mxu0
    %v117 = vadd.f32 0.0, %v116
    %v118 = vpop.f32.mrf.mxu0
    %119 = vmatprep.mubr.f32.mxu0 0.0
    %120 = vmatmul.mubr.f32.gmra.mxu0 %v34
    %v121 = vpop.f32.mrf.mxu0
    %v122 = vadd.f32 0.0, %v121
    %v123 = vpop.f32.mrf.mxu0
    %124 = vmatprep.mubr.f32.mxu0 0.0
    %125 = vmatmul.mubr.f32.gmra.mxu0 %v37
    %v126 = vpop.f32.mrf.mxu0
    %v127 = vadd.f32 0.0, %v126
    %v128 = vpop.f32.mrf.mxu0
    %129 = vmatprep.mubr.f32.mxu0 0.0
    %130 = vmatmul.mubr.f32.gmra.mxu0 %v40
    %v131 = vpop.f32.mrf.mxu0
    %v132 = vadd.f32 0.0, %v131
    %v133 = vpop.f32.mrf.mxu0
    %134 = vmatprep.mubr.f32.mxu0 0.0
    %135 = vmatmul.mubr.f32.gmra.mxu0 %v43
    %v136 = vpop.f32.mrf.mxu0
    %v137 = vadd.f32 0.0, %v136
    %v138 = vpop.f32.mrf.mxu0
    %139 = vdwg.mxu0
    %142 = vrot.lane.b32.xlu0 %v122, 4
    %v143 = vpop.permute.xlu0 %142
    %144 = vrot.lane.b32.xlu0 %v127, 4
    %v145 = vpop.permute.xlu0 %144
    %150 = vrot.lane.b32.xlu0 %v132, 8
    %v151 = vpop.permute.xlu0 %150
    %152 = vrot.lane.b32.xlu0 %v137, 8
    %v153 = vpop.permute.xlu0 %152
    %vm156 = vcmask 31744
    %v157 = vsel %vm156, %v112, %v143
    %v158 = vsel %vm156, %v117, %v145
    %vm159 = vcmask 64512
    %v160 = vsel %vm159, %v157, %v151
    %v161 = vsel %vm159, %v158, %v153
    %164 = vrot.lane.b32.xlu0 %v112, 124
    %v165 = vpop.permute.xlu0 %164
    %166 = vrot.lane.b32.xlu0 %v117, 124
    %v167 = vpop.permute.xlu0 %166
    %170 = vrot.lane.b32.xlu0 %v132, 4
    %v171 = vpop.permute.xlu0 %170
    %172 = vrot.lane.b32.xlu0 %v137, 4
    %v173 = vpop.permute.xlu0 %172
    %v176 = vsel %vm156, %v165, %v122
    %v177 = vsel %vm156, %v167, %v127
    %v178 = vsel %vm159, %v176, %v171
    %v179 = vsel %vm159, %v177, %v173
    %v180 = vld [vmem:[%s2] sm:$0xff]
    %v181 = vld [vmem:[%s2 + $0x8] sm:$0xf]
    %v182 = vld [vmem:[%s3] sm:$0x1]
    %v184 = vlaneseq
    %v185 = vshrl.u32 %v184, 7
    %v186 = vsub.s32 0, %v185
    %v187 = vrot.slane %v182, %v186
    %vm189 = vcmask 97280
    %v191 = vsel %vm189, %v160, 0
    %v194 = vsel %vm189, %v161, 0
    %v197 = vsel %vm189, %v178, 0
    %v200 = vsel %vm189, %v179, 0
    %vm202 = vcmask 1043456
    %v204 = vsel %vm202, %v181, 0
    %206 = vmatprep.subr.mxu0 0.0
    %207 = vmatpush1.msra.mxu0 0.0
    %208 = vmatprep.subr.mxu0 0.0
    %209 = vmatpush1.msra.mxu0 0.0
    %210 = vmatprep.subr.mxu0 0.0
    %211 = vmatpush1.msra.mxu0 0.0
    %212 = vmatprep.subr.mxu0 0.0
    %213 = vmatpush1.msra.mxu0 0.0
    %214 = vmatprep.subr.mxu0 0.0
    %215 = vmatpush1.msra.mxu0 0.0
    %216 = vmatprep.subr.mxu0 0.0
    %217 = vmatpush1.msra.mxu0 0.0
    %218 = vmatprep.subr.mxu0 0.0
    %219 = vmatpush1.msra.mxu0 0.0
    %220 = vmatprep.subr.mxu0 0.0
    %221 = vmatpush1.msra.mxu0 0.0
    %222 = vmatprep.subr.mxu0 0.0
    %223 = vmatpush1.msra.mxu0 0.0
    %224 = vmatprep.subr.mxu0 0.0
    %225 = vmatpush1.msra.mxu0 0.0
    %226 = vmatprep.subr.mxu0 0.0
    %227 = vmatpush1.msra.mxu0 0.0
    %228 = vmatprep.subr.mxu0 0.0
    %229 = vmatpush1.msra.mxu0 0.0
    %230 = vmatprep.subr.mxu0 0.0
    %231 = vmatpush1.msra.mxu0 0.0
    %232 = vmatprep.subr.mxu0 0.0
    %233 = vmatpush1.msra.mxu0 0.0
    %234 = vmatprep.subr.mxu0 0.0
    %235 = vmatpush1.msra.mxu0 %v204
    %236 = vmatprep.subr.mxu0 0.0
    %237 = vmatpush1.msra.mxu0 %v180
    %238 = vmatprep.subr.mxu0 0.0
    %239 = vmatpush2.msra.mxu0 0.0
    %240 = vmatprep.subr.mxu0 0.0
    %241 = vmatpush2.msra.mxu0 0.0
    %242 = vmatprep.subr.mxu0 0.0
    %243 = vmatpush2.msra.mxu0 0.0
    %244 = vmatprep.subr.mxu0 0.0
    %245 = vmatpush2.msra.mxu0 0.0
    %246 = vmatprep.subr.mxu0 0.0
    %247 = vmatpush2.msra.mxu0 0.0
    %248 = vmatprep.subr.mxu0 0.0
    %249 = vmatpush2.msra.mxu0 0.0
    %250 = vmatprep.subr.mxu0 0.0
    %251 = vmatpush2.msra.mxu0 0.0
    %252 = vmatprep.subr.mxu0 0.0
    %253 = vmatpush2.msra.mxu0 0.0
    %254 = vmatprep.subr.mxu0 0.0
    %255 = vmatpush2.msra.mxu0 0.0
    %256 = vmatprep.subr.mxu0 0.0
    %257 = vmatpush2.msra.mxu0 0.0
    %258 = vmatprep.subr.mxu0 0.0
    %259 = vmatpush2.msra.mxu0 0.0
    %260 = vmatprep.subr.mxu0 0.0
    %261 = vmatpush2.msra.mxu0 0.0
    %262 = vmatprep.subr.mxu0 0.0
    %263 = vmatpush2.msra.mxu0 0.0
    %264 = vmatprep.subr.mxu0 0.0
    %265 = vmatpush2.msra.mxu0 0.0
    %266 = vmatprep.subr.mxu0 0.0
    %267 = vmatpush2.msra.mxu0 0.0
    %268 = vmatprep.subr.mxu0 0.0
    %269 = vmatpush2.msra.mxu0 0.0
    %270 = vmatprep.mubr.f32.mxu0 0.0
    %271 = vmatmul.mubr.f32.gmra.mxu0 %v191
    %v272 = vpop.f32.mrf.mxu0
    %v273 = vadd.f32 %v187, %v272
    %v274 = vpop.f32.mrf.mxu0
    %275 = vmatprep.mubr.f32.mxu0 0.0
    %276 = vmatmul.mubr.f32.gmra.mxu0 %v194
    %v277 = vpop.f32.mrf.mxu0
    %v278 = vadd.f32 %v187, %v277
    %v279 = vpop.f32.mrf.mxu0
    %280 = vmatprep.mubr.f32.mxu0 0.0
    %281 = vmatmul.mubr.f32.gmra.mxu0 %v197
    %v282 = vpop.f32.mrf.mxu0
    %v283 = vadd.f32 %v187, %v282
    %v284 = vpop.f32.mrf.mxu0
    %285 = vmatprep.mubr.f32.mxu0 0.0
    %286 = vmatmul.mubr.f32.gmra.mxu0 %v200
    %v287 = vpop.f32.mrf.mxu0
    %v288 = vadd.f32 %v187, %v287
    %v289 = vpop.f32.mrf.mxu0
    %290 = vdwg.mxu0
    %v291 = vmax.f32 %v273, 0.0
    %v292 = vmax.f32 %v278, 0.0
    %v293 = vmax.f32 %v283, 0.0
    %v294 = vmax.f32 %v288, 0.0
    %vm295 = vcmask 261120
    %296 = vst.msk [vmem:[#allocation2] sm:$0xff] %vm295, %v291
    %297 = vst.msk [vmem:[#allocation2 + $0x8] sm:$0xff] %vm295, %v292
    %298 = vst.msk [vmem:[#allocation2 + $0x10] sm:$0xff] %vm295, %v293
    %299 = vst.msk [vmem:[#allocation2 + $0x18] sm:$0xff] %vm295, %v294
    // Predicated region
    $region18: #{tpu_custom_call.1} parent=1 // pred_check
      _
    $region19: #{tpu_custom_call.1} parent=1 // pred_check_branch
      %301 = sbr.rel (0) target = $region21
    $region20: #{tpu_custom_call.1} parent=1 // pred_region
      %s303 = ssub.s32 512, 512
      %304 = vsyncadd [#allocation3], %s303
      %s305 = sshll.u32 [#allocation2], 4
      %s306 = int_to_ptr.vmem [resolvable:$true] %s305
      %311 = dma.vmem_to_hbm [thread:$0]  %s306, 512, %s4, [#allocation3], 128, 128, 8
    $region21: #{tpu_custom_call.1} parent=1 // pred_fallthru
      _
    // Predicated region
    $region22: #{tpu_custom_call.1} parent=1 // pred_check
      _
    $region23: #{tpu_custom_call.1} parent=1 // pred_check_branch
      %313 = sbr.rel (0) target = $region25
    $region24: #{tpu_custom_call.1} parent=1 // pred_region
      %314 = dma.done [#allocation3], 512
    $region25: #{tpu_custom_call.1} parent=1 // pred_fallthru
      _
    %315 = vsyncpa [#allocation3], 1

</llo_original>
